<compile_context>
chip_gen: v6e
topology: v6e:2x2x1
jax: 0.10.0
libtpu: 0.0.40
codegen_flags: <defaults>
</compile_context>

<pallas_src>
import functools
import math

import jax
import jax.numpy as jnp
from jax import lax
from jax.experimental import pallas as pl
from jax.experimental.pallas import tpu as pltpu


# ---------------------------------------------------------------------------
# helpers
# ---------------------------------------------------------------------------
def _vmem_budget_bytes():
    try:
        return int(pltpu.get_tpu_info().vmem_capacity_bytes)
    except Exception:
        return 64 * 1024 * 1024  # conservative (v7x per-core VMEM)


def _compiler_params(dimension_semantics):
    return pltpu.CompilerParams(
        dimension_semantics=dimension_semantics,
        vmem_limit_bytes=int(_vmem_budget_bytes() * 3 // 4),
    )


def _pick_tile(dim, preferred, step=8):
    # largest power-of-two-ish divisor of `dim` that is <= preferred and a
    # multiple of `step`; fall back to the full dim (block dim == array dim).
    t = preferred
    while t >= step:
        if t <= dim and dim % t == 0 and t % step == 0:
            return t
        t //= 2
    return dim


def _qkv_seq_tile(S, D, d_k, itemsize, budget):
    # per-step VMEM (double buffered): x(bs,D) + 3*w(D,d_k) + 3*out(bs,d_k)
    fixed = 3 * D * d_k
    avail = budget // (2 * itemsize) - fixed
    per_row = D + 3 * d_k
    cap = max(8, avail // max(per_row, 1)) if avail > 0 else 8
    preferred = 8
    while preferred * 2 <= min(1024, cap):
        preferred *= 2
    return _pick_tile(S, preferred)


# ---------------------------------------------------------------------------
# Parameter prep (once, OUTSIDE the forward path)
# ---------------------------------------------------------------------------
def prepare_mhsa_params(wq, wk, wv, wo, *, num_heads):
    """nn.Linear weights are (out_features, in_features).  Re-lay-out once:
       wq/wk/wv -> (H, D_in, d_k)  (per-head, input-major: y = x @ w_h)
       wo       -> (H, d_k, D_out) (per-head slab for the head-reduction)."""
    D = wq.shape[1]
    d_k = D // num_heads

    def per_head_in_major(w):  # (H*d_k, D) -> (H, D, d_k)
        return jnp.transpose(w.reshape(num_heads, d_k, D), (0, 2, 1))

    wo_h = jnp.transpose(wo, (1, 0)).reshape(num_heads, d_k, D)  # (H, d_k, D)
    return per_head_in_major(wq), per_head_in_major(wk), per_head_in_major(wv), wo_h


# ---------------------------------------------------------------------------
# Phase 1: fused QKV projection, head-major output (B, H, S, d_k)
# ---------------------------------------------------------------------------
def _qkv_proj_kernel(x_ref, wq_ref, wk_ref, wv_ref, q_ref, k_ref, v_ref, *, q_scale):
    x = x_ref[...]                                   # (bs, D)
    dn = (((1,), (0,)), ((), ()))                    # contract model dim, no transposes
    q = lax.dot_general(x, wq_ref[...], dn, preferred_element_type=jnp.float32)
    k = lax.dot_general(x, wk_ref[...], dn, preferred_element_type=jnp.float32)
    v = lax.dot_general(x, wv_ref[...], dn, preferred_element_type=jnp.float32)
    # fold log2(e)/sqrt(d_k) into Q so the flash kernel uses exp2 directly
    q_ref[...] = (q * q_scale).astype(q_ref.dtype)
    k_ref[...] = k.astype(k_ref.dtype)
    v_ref[...] = v.astype(v_ref.dtype)


def _qkv_proj(x, wq_h, wk_h, wv_h, *, q_scale):
    B, S, D = x.shape
    H, _, d_k = wq_h.shape
    itemsize = x.dtype.itemsize
    bs = _qkv_seq_tile(S, D, d_k, itemsize, _vmem_budget_bytes() // 2)
    # head axis OUTER, seq axis INNER -> weight slabs stay VMEM-resident
    # across the whole sequence sweep (index map ignores si).
    grid = (B, H, S // bs)

    x_spec = pl.BlockSpec((None, bs, D), lambda b, h, si: (b, si, 0))
    w_spec = pl.BlockSpec((None, D, d_k), lambda b, h, si: (h, 0, 0))
    o_spec = pl.BlockSpec((None, None, bs, d_k), lambda b, h, si: (b, h, si, 0))
    out_sd = jax.ShapeDtypeStruct((B, H, S, d_k), x.dtype)

    ce = pl.CostEstimate(
        flops=2 * 3 * B * S * D * D,
        transcendentals=0,
        bytes_accessed=itemsize * (H * B * S * D + 3 * B * D * D + 3 * B * S * D))
    return pl.pallas_call(
        functools.partial(_qkv_proj_kernel, q_scale=q_scale),
        out_shape=(out_sd, out_sd, out_sd),
        grid=grid,
        in_specs=[x_spec, w_spec, w_spec, w_spec],
        out_specs=(o_spec, o_spec, o_spec),
        compiler_params=_compiler_params(("parallel", "parallel", "parallel")),
        cost_estimate=ce,
    )(x, wq_h, wk_h, wv_h)


# ---------------------------------------------------------------------------
# Phase 2: flash attention, online softmax in base-2, causal
# ---------------------------------------------------------------------------
def _flash_attn_kernel(q_ref, k_ref, v_ref, o_ref, m_ref, l_ref, acc_ref,
                       *, block_q, block_k):
    qi = pl.program_id(2)
    ki = pl.program_id(3)

    q_start = qi * block_q
    k_start = ki * block_k
    needed = k_start <= q_start + block_q - 1         # tile intersects causal region
    straddles = k_start + block_k - 1 > q_start       # tile straddles the diagonal

    @pl.when(ki == 0)
    def _init():
        m_ref[...] = jnp.full(m_ref.shape, -jnp.inf, jnp.float32)
        l_ref[...] = jnp.zeros(l_ref.shape, jnp.float32)
        acc_ref[...] = jnp.zeros(acc_ref.shape, jnp.float32)

    def _update(apply_mask):
        q = q_ref[...]                                 # (bq, dk), pre-scaled by log2(e)/sqrt(dk)
        k = k_ref[...]                                 # (bk, dk)
        v = v_ref[...]                                 # (bk, dk)
        s = lax.dot_general(q, k, (((1,), (1,)), ((), ())),
                            preferred_element_type=jnp.float32)    # (bq, bk) f32
        if apply_mask:
            q_pos = q_start + lax.broadcasted_iota(jnp.int32, (block_q, block_k), 0)
            k_pos = k_start + lax.broadcasted_iota(jnp.int32, (block_q, block_k), 1)
            s = jnp.where(k_pos <= q_pos, s, jnp.float32(-1e30))
        m_prev = m_ref[...]
        m_new = jnp.maximum(m_prev, jnp.max(s, axis=-1, keepdims=True))
        alpha = jnp.exp2(m_prev - m_new)               # base-2 online softmax
        p = jnp.exp2(s - m_new)
        l_ref[...] = alpha * l_ref[...] + jnp.sum(p, axis=-1, keepdims=True)
        acc_ref[...] = alpha * acc_ref[...] + lax.dot_general(
            p.astype(v.dtype), v, (((1,), (0,)), ((), ())),
            preferred_element_type=jnp.float32)
        m_ref[...] = m_new

    # 3-way tile classification: masked (diagonal-straddling) / fully visible / dead.
    # NOTE: guards use the UNCLAMPED ki so DMA-skipped dead tiles never contribute.
    @pl.when(needed & straddles)
    def _masked_tile():
        _update(apply_mask=True)

    @pl.when(needed & jnp.logical_not(straddles))
    def _full_tile():
        _update(apply_mask=False)

    @pl.when(ki == pl.num_programs(3) - 1)
    def _finalize():
        l = l_ref[...]
        inv = pl.reciprocal(l, approx=True)            # EUP slot
        inv = inv * (2.0 - l * inv)                    # one Newton step on a (bq,1) vector
        o_ref[...] = (acc_ref[...] * inv).astype(o_ref.dtype)


def _flash_attention(q, k, v):
    B, H, S, d_k = q.shape
    bq = _pick_tile(S, 512)
    bk = _pick_tile(S, 512)
    grid = (B, H, S // bq, S // bk)

    def q_map(b, h, qi, ki):
        return (b, h, qi, 0)

    def kv_map(b, h, qi, ki):
        # Clamp to the last causally-needed kv block for this qi: fully-masked
        # steps repeat the previous block index, so the pipeline skips the DMA.
        last_needed = (qi * bq + bq - 1) // bk
        return (b, h, jnp.minimum(ki, last_needed), 0)

    q_spec = pl.BlockSpec((None, None, bq, d_k), q_map)
    kv_spec = pl.BlockSpec((None, None, bk, d_k), kv_map)
    o_spec = pl.BlockSpec((None, None, bq, d_k), q_map)

    itemsize = q.dtype.itemsize
    ce = pl.CostEstimate(
        flops=2 * B * H * S * S * d_k,                 # ~causal half of 2*2*...
        transcendentals=B * H * S * S // 2,
        bytes_accessed=itemsize * 4 * B * H * S * d_k)
    return pl.pallas_call(
        functools.partial(_flash_attn_kernel, block_q=bq, block_k=bk),
        out_shape=jax.ShapeDtypeStruct((B, H, S, d_k), q.dtype),
        grid=grid,
        in_specs=[q_spec, kv_spec, kv_spec],
        out_specs=o_spec,
        scratch_shapes=[
            pltpu.VMEM((bq, 1), jnp.float32),          # running max (base-2 domain)
            pltpu.VMEM((bq, 1), jnp.float32),          # running sum
            pltpu.VMEM((bq, d_k), jnp.float32),        # f32 output accumulator
        ],
        compiler_params=_compiler_params(
            ("parallel", "parallel", "parallel", "arbitrary")),
        cost_estimate=ce,
    )(q, k, v)


# ---------------------------------------------------------------------------
# Phase 3: output projection consuming (B, H, S, d_k) directly
#          (head axis is a reduction grid axis -> no merge transpose)
# ---------------------------------------------------------------------------
def _out_proj_kernel(a_ref, w_ref, o_ref, acc_ref):
    h = pl.program_id(3)

    @pl.when(h == 0)
    def _init():
        acc_ref[...] = jnp.zeros(acc_ref.shape, jnp.float32)

    acc_ref[...] += lax.dot_general(
        a_ref[...], w_ref[...], (((1,), (0,)), ((), ())),
        preferred_element_type=jnp.float32)

    @pl.when(h == pl.num_programs(3) - 1)
    def _store():
        o_ref[...] = acc_ref[...].astype(o_ref.dtype)


def _out_proj(attn, wo_h):
    B, H, S, d_k = attn.shape
    D = wo_h.shape[2]
    bs = _pick_tile(S, 512)
    bn = _pick_tile(D, 512, step=128)
    grid = (B, D // bn, S // bs, H)                    # head-reduction innermost

    a_spec = pl.BlockSpec((None, None, bs, d_k), lambda b, ni, si, h: (b, h, si, 0))
    w_spec = pl.BlockSpec((None, d_k, bn), lambda b, ni, si, h: (h, 0, ni))
    o_spec = pl.BlockSpec((None, bs, bn), lambda b, ni, si, h: (b, si, ni))

    itemsize = attn.dtype.itemsize
    ce = pl.CostEstimate(
        flops=2 * B * S * H * d_k * D,
        transcendentals=0,
        bytes_accessed=itemsize * (B * S * H * d_k + B * H * d_k * D + B * S * D))
    return pl.pallas_call(
        _out_proj_kernel,
        out_shape=jax.ShapeDtypeStruct((B, S, D), attn.dtype),
        grid=grid,
        in_specs=[a_spec, w_spec],
        out_specs=o_spec,
        scratch_shapes=[pltpu.VMEM((bs, bn), jnp.float32)],
        compiler_params=_compiler_params(
            ("parallel", "parallel", "parallel", "arbitrary")),
        cost_estimate=ce,
    )(attn, wo_h)


# ---------------------------------------------------------------------------
# Full forward: matches MultiheadSelfAttention.forward (no RoPE path)
# ---------------------------------------------------------------------------
def multihead_self_attention(x, wq_h, wk_h, wv_h, wo_h):
    # TODO(synk): RoPE (theta/max_seq_len/token_positions) not implemented.
    _, _, d_k = wq_h.shape
    q_scale = math.log2(math.e) / math.sqrt(d_k)       # 1/sqrt(d_k) + exp->exp2 fold
    q, k, v = _qkv_proj(x, wq_h, wk_h, wv_h, q_scale=q_scale)   # (B,H,S,d_k)
    attn = _flash_attention(q, k, v)                            # (B,H,S,d_k)
    return _out_proj(attn, wo_h)                                # (B,S,D)


# ---------------------------------------------------------------------------
# Reference + test
# ---------------------------------------------------------------------------
def _reference(x, wq, wk, wv, wo, num_heads):
    B, S, D = x.shape
    d_k = D // num_heads
    q = x @ wq.T
    k = x @ wk.T
    v = x @ wv.T
    q = q.reshape(B, S, num_heads, d_k).transpose(0, 2, 1, 3)
    k = k.reshape(B, S, num_heads, d_k).transpose(0, 2, 1, 3)
    v = v.reshape(B, S, num_heads, d_k).transpose(0, 2, 1, 3)
    s = jnp.einsum("bhqd,bhkd->bhqk", q, k) / math.sqrt(d_k)
    mask = jnp.tril(jnp.ones((S, S), dtype=bool))[None, None]
    s = jnp.where(mask, s, -1e30)
    p = jax.nn.softmax(s, axis=-1)
    o = jnp.einsum("bhqk,bhkd->bhqd", p, v)
    o = o.transpose(0, 2, 1, 3).reshape(B, S, D)
    return o @ wo.T


if __name__ == "__main__":
    B, S, D_MODEL, NUM_HEADS = 2, 8, 32, 4

    key = jax.random.PRNGKey(0)
    kx, kq, kk, kv, ko = jax.random.split(key, 5)
    x = jax.random.normal(kx, (B, S, D_MODEL), dtype=jnp.float32)
    # nn.Linear-style weights: (out_features, in_features)
    wscale = 1.0 / math.sqrt(D_MODEL)
    wq = jax.random.normal(kq, (D_MODEL, D_MODEL), dtype=jnp.float32) * wscale
    wk = jax.random.normal(kk, (D_MODEL, D_MODEL), dtype=jnp.float32) * wscale
    wv = jax.random.normal(kv, (D_MODEL, D_MODEL), dtype=jnp.float32) * wscale
    wo = jax.random.normal(ko, (D_MODEL, D_MODEL), dtype=jnp.float32) * wscale

    # weight re-layout happens ONCE here, outside the forward path
    params = prepare_mhsa_params(wq, wk, wv, wo, num_heads=NUM_HEADS)

    out = multihead_self_attention(x, *params)
    out = jax.block_until_ready(out)

    ref = _reference(x, wq, wk, wv, wo, NUM_HEADS)
    assert out.shape == (B, S, D_MODEL)
    assert jnp.allclose(out, ref, atol=1e-3, rtol=1e-3), "mismatch vs reference"
    print("KERNEL_OK")
</pallas_src>

<mosaic_0001>
module attributes {stable_mosaic.version = 11 : i64} {
  func.func @_qkv_proj_kernel(%arg0: i32, %arg1: i32, %arg2: i32, %arg3: memref<1x8x32xf32, #tpu.memory_space<vmem>>, %arg4: memref<1x32x8xf32, #tpu.memory_space<vmem>>, %arg5: memref<1x32x8xf32, #tpu.memory_space<vmem>>, %arg6: memref<1x32x8xf32, #tpu.memory_space<vmem>>, %arg7: memref<1x1x8x8xf32, #tpu.memory_space<vmem>>, %arg8: memref<1x1x8x8xf32, #tpu.memory_space<vmem>>, %arg9: memref<1x1x8x8xf32, #tpu.memory_space<vmem>>) attributes {dimension_semantics = [#tpu.dimension_semantics<parallel>, #tpu.dimension_semantics<parallel>, #tpu.dimension_semantics<parallel>], iteration_bounds = array<i64: 2, 4, 1>, scalar_prefetch = 0 : i64, scratch_operands = 0 : i64, tpu.core_type = #tpu.core_type<tc>, window_params = [{transform_indices = @transform_0, window_bounds = array<i64: 1, 8, 32>}, {transform_indices = @transform_1, window_bounds = array<i64: 1, 32, 8>}, {transform_indices = @transform_2, window_bounds = array<i64: 1, 32, 8>}, {transform_indices = @transform_3, window_bounds = array<i64: 1, 32, 8>}, {transform_indices = @transform_4, window_bounds = array<i64: 1, 1, 8, 8>}, {transform_indices = @transform_5, window_bounds = array<i64: 1, 1, 8, 8>}, {transform_indices = @transform_6, window_bounds = array<i64: 1, 1, 8, 8>}]} {
    %c0 = arith.constant 0 : index
    %c0_0 = arith.constant 0 : index
    %c0_1 = arith.constant 0 : index
    %0 = vector.load %arg3[%c0, %c0_0, %c0_1] : memref<1x8x32xf32, #tpu.memory_space<vmem>>, vector<1x8x32xf32>
    %1 = vector.shape_cast %0 : vector<1x8x32xf32> to vector<8x32xf32>
    %c0_2 = arith.constant 0 : index
    %c0_3 = arith.constant 0 : index
    %c0_4 = arith.constant 0 : index
    %2 = vector.load %arg4[%c0_2, %c0_3, %c0_4] : memref<1x32x8xf32, #tpu.memory_space<vmem>>, vector<1x32x8xf32>
    %3 = vector.shape_cast %2 : vector<1x32x8xf32> to vector<32x8xf32>
    %cst = arith.constant dense<0.000000e+00> : vector<8x8xf32>
    %4 = tpu.matmul %1, %3, %cst {dimension_numbers = #tpu.dot_dimension_numbers<[1], [0], [0], [1], [0, 0, 1, 1], [], []>} : vector<8x32xf32>, vector<32x8xf32>, vector<8x8xf32> -> vector<8x8xf32>
    %c0_5 = arith.constant 0 : index
    %c0_6 = arith.constant 0 : index
    %c0_7 = arith.constant 0 : index
    %5 = vector.load %arg5[%c0_5, %c0_6, %c0_7] : memref<1x32x8xf32, #tpu.memory_space<vmem>>, vector<1x32x8xf32>
    %6 = vector.shape_cast %5 : vector<1x32x8xf32> to vector<32x8xf32>
    %cst_8 = arith.constant dense<0.000000e+00> : vector<8x8xf32>
    %7 = tpu.matmul %1, %6, %cst_8 {dimension_numbers = #tpu.dot_dimension_numbers<[1], [0], [0], [1], [0, 0, 1, 1], [], []>} : vector<8x32xf32>, vector<32x8xf32>, vector<8x8xf32> -> vector<8x8xf32>
    %c0_9 = arith.constant 0 : index
    %c0_10 = arith.constant 0 : index
    %c0_11 = arith.constant 0 : index
    %8 = vector.load %arg6[%c0_9, %c0_10, %c0_11] : memref<1x32x8xf32, #tpu.memory_space<vmem>>, vector<1x32x8xf32>
    %9 = vector.shape_cast %8 : vector<1x32x8xf32> to vector<32x8xf32>
    %cst_12 = arith.constant dense<0.000000e+00> : vector<8x8xf32>
    %10 = tpu.matmul %1, %9, %cst_12 {dimension_numbers = #tpu.dot_dimension_numbers<[1], [0], [0], [1], [0, 0, 1, 1], [], []>} : vector<8x32xf32>, vector<32x8xf32>, vector<8x8xf32> -> vector<8x8xf32>
    %cst_13 = arith.constant 0.510069728 : f32
    %11 = vector.broadcast %cst_13 : f32 to vector<8x8xf32>
    %12 = arith.mulf %4, %11 : vector<8x8xf32>
    %c0_14 = arith.constant 0 : index
    %c0_15 = arith.constant 0 : index
    %c0_16 = arith.constant 0 : index
    %c0_17 = arith.constant 0 : index
    %13 = vector.load %arg7[%c0_14, %c0_15, %c0_16, %c0_17] : memref<1x1x8x8xf32, #tpu.memory_space<vmem>>, vector<1x1x8x8xf32>
    %14 = vector.shape_cast %13 : vector<1x1x8x8xf32> to vector<8x8xf32>
    %15 = vector.shape_cast %12 : vector<8x8xf32> to vector<1x1x8x8xf32>
    tpu.vector_store %arg7[%c0_14, %c0_15, %c0_16, %c0_17], %15 {strides = array<i32>} : memref<1x1x8x8xf32, #tpu.memory_space<vmem>>, vector<1x1x8x8xf32>,
    %c0_18 = arith.constant 0 : index
    %c0_19 = arith.constant 0 : index
    %c0_20 = arith.constant 0 : index
    %c0_21 = arith.constant 0 : index
    %16 = vector.load %arg8[%c0_18, %c0_19, %c0_20, %c0_21] : memref<1x1x8x8xf32, #tpu.memory_space<vmem>>, vector<1x1x8x8xf32>
    %17 = vector.shape_cast %16 : vector<1x1x8x8xf32> to vector<8x8xf32>
    %18 = vector.shape_cast %7 : vector<8x8xf32> to vector<1x1x8x8xf32>
    tpu.vector_store %arg8[%c0_18, %c0_19, %c0_20, %c0_21], %18 {strides = array<i32>} : memref<1x1x8x8xf32, #tpu.memory_space<vmem>>, vector<1x1x8x8xf32>,
    %c0_22 = arith.constant 0 : index
    %c0_23 = arith.constant 0 : index
    %c0_24 = arith.constant 0 : index
    %c0_25 = arith.constant 0 : index
    %19 = vector.load %arg9[%c0_22, %c0_23, %c0_24, %c0_25] : memref<1x1x8x8xf32, #tpu.memory_space<vmem>>, vector<1x1x8x8xf32>
    %20 = vector.shape_cast %19 : vector<1x1x8x8xf32> to vector<8x8xf32>
    %21 = vector.shape_cast %10 : vector<8x8xf32> to vector<1x1x8x8xf32>
    tpu.vector_store %arg9[%c0_22, %c0_23, %c0_24, %c0_25], %21 {strides = array<i32>} : memref<1x1x8x8xf32, #tpu.memory_space<vmem>>, vector<1x1x8x8xf32>,
    return
  }
  func.func @transform_0(%arg0: i32, %arg1: i32, %arg2: i32) -> (i32, i32, i32) {
    %c0_i32 = arith.constant 0 : i32
    %c0_i32_0 = arith.constant 0 : i32
    return %arg0, %arg2, %c0_i32 : i32, i32, i32
  }
  func.func @transform_1(%arg0: i32, %arg1: i32, %arg2: i32) -> (i32, i32, i32) {
    %c0_i32 = arith.constant 0 : i32
    %c0_i32_0 = arith.constant 0 : i32
    %c0_i32_1 = arith.constant 0 : i32
    return %arg1, %c0_i32, %c0_i32_0 : i32, i32, i32
  }
  func.func @transform_2(%arg0: i32, %arg1: i32, %arg2: i32) -> (i32, i32, i32) {
    %c0_i32 = arith.constant 0 : i32
    %c0_i32_0 = arith.constant 0 : i32
    %c0_i32_1 = arith.constant 0 : i32
    return %arg1, %c0_i32, %c0_i32_0 : i32, i32, i32
  }
  func.func @transform_3(%arg0: i32, %arg1: i32, %arg2: i32) -> (i32, i32, i32) {
    %c0_i32 = arith.constant 0 : i32
    %c0_i32_0 = arith.constant 0 : i32
    %c0_i32_1 = arith.constant 0 : i32
    return %arg1, %c0_i32, %c0_i32_0 : i32, i32, i32
  }
  func.func @transform_4(%arg0: i32, %arg1: i32, %arg2: i32) -> (i32, i32, i32, i32) {
    %c0_i32 = arith.constant 0 : i32
    %c0_i32_0 = arith.constant 0 : i32
    return %arg0, %arg1, %arg2, %c0_i32 : i32, i32, i32, i32
  }
  func.func @transform_5(%arg0: i32, %arg1: i32, %arg2: i32) -> (i32, i32, i32, i32) {
    %c0_i32 = arith.constant 0 : i32
    %c0_i32_0 = arith.constant 0 : i32
    return %arg0, %arg1, %arg2, %c0_i32 : i32, i32, i32, i32
  }
  func.func @transform_6(%arg0: i32, %arg1: i32, %arg2: i32) -> (i32, i32, i32, i32) {
    %c0_i32 = arith.constant 0 : i32
    %c0_i32_0 = arith.constant 0 : i32
    return %arg0, %arg1, %arg2, %c0_i32 : i32, i32, i32, i32
  }
}

</mosaic_0001>

<llo_original>
// kernel: tpu_custom_call.1
$region0: #{tpu_custom_call.1}
  #allocation0 [shape = 'u32[]', space=smem, size = 0x4, offset = 0x4, fixed_abs, tag = 'smem constant byte address 0x4 - core index']
  #allocation1 [shape = 'u32[144,128]{1,0:T(1,128)}', space=vmem, size = 0x12000, scoped, tag = 'internal scratch']
  %s0 = inlined_call_operand.vmem [shape: f32[2,8,32], index: 0, kind: input, shape index: {}]
  %s1 = inlined_call_operand.vmem [shape: f32[4,32,8], index: 1, kind: input, shape index: {}]
  %s2 = inlined_call_operand.vmem [shape: f32[4,32,8], index: 2, kind: input, shape index: {}]
  %s3 = inlined_call_operand.vmem [shape: f32[4,32,8], index: 3, kind: input, shape index: {}]
  %s4 = inlined_call_operand.hbm [shape: f32[2,4,8,8], index: 4, kind: output, shape index: {0}]
  %s5 = inlined_call_operand.hbm [shape: f32[2,4,8,8], index: 5, kind: output, shape index: {1}]
  %s6 = inlined_call_operand.hbm [shape: f32[2,4,8,8], index: 6, kind: output, shape index: {2}]
  %7 = xla_tuple %s4, %s5, %s6
  %s8 = sld [smem:[#allocation0]]
  $region65: #{tpu_custom_call.1} parent=0
    _
  %s10 = ssub.s32 1, %s8
  %s11 = scalar_select 0, %s10, %s8
  $region1: #{tpu_custom_call.1} parent=0
    #allocation2 [shape = 'u8[8192]{0}', space=vmem, size = 0x2000, scoped, tag = 'output window, operand 0']
    #allocation3 [shape = 's32[2]{0}', space=sflag, size = 0x8, scoped, tag = 'scoped memory for tpu_custom_call.1']
    #allocation4 [shape = 'u8[8192]{0}', space=vmem, size = 0x2000, scoped, tag = 'output window, operand 1']
    #allocation5 [shape = 's32[2]{0}', space=sflag, size = 0x8, scoped, tag = 'scoped memory for tpu_custom_call.1']
    #allocation6 [shape = 'u8[8192]{0}', space=vmem, size = 0x2000, scoped, tag = 'output window, operand 2']
    %12 = vsyncpa [#allocation3], 0
    %s13 = scalar_lea.sflag [#allocation3], 1
    %14 = vsyncpa %s13, 0
    %15 = vsyncpa [#allocation5], 0
    %s16 = scalar_lea.sflag [#allocation5], 1
    %17 = vsyncpa %s16, 0
    loop: start=0, step=1, limit=10
    $region2: #{tpu_custom_call.1} parent=1 // loop_pre_header
      _
    $region3: #{tpu_custom_call.1} parent=1 // loop_header
      %s19 = sphi 0, %s23
      %p20 = scmp.ge.s32.totalorder %s19, 10
      %s26 = sphi 0, %s45
      %s27 = sphi 0, %s41
      %s28 = sphi 0, %s37
      %s29 = sphi 0, %s26
      %s30 = sphi 0, %s27
      %s31 = sphi 0, %s28
      %s32 = sphi 0, %s29
      %s33 = sphi 0, %s30
      %s34 = sphi 0, %s31
      %s50 = sphi 0, %s52
      %s53 = sphi 0, %s50
      %s54 = sphi 0, %s53
      %s70 = sphi 0, %s54
      %s76 = sphi 0, %s78
      %s79 = sphi 0, %s76
      %s80 = sphi 0, %s79
      %s96 = sphi 0, %s80
      %s102 = sphi 0, %s104
      %s105 = sphi 0, %s102
      %s106 = sphi 0, %s105
      %s122 = sphi 0, %s106
      %s128 = sphi 0, %s130
      %s131 = sphi 0, %s128
      %s132 = sphi 0, %s131
      %s148 = sphi 0, %s132
      %s158 = sphi 0, %s160
      %s161 = sphi 0, %s158
      %s162 = sphi 0, %s161
      %s178 = sphi 0, %s162
      %s188 = sphi 0, %s190
      %s191 = sphi 0, %s188
      %s192 = sphi 0, %s191
      %s208 = sphi 0, %s192
      %s218 = sphi 0, %s220
      %s221 = sphi 0, %s218
      %s222 = sphi 0, %s221
      %s238 = sphi 0, %s222
    $region4: #{tpu_custom_call.1} parent=1 // loop_header_branch
      %22 = sbr.rel (%p20) target = $region8
    $region5: #{tpu_custom_call.1} parent=1 // loop_body
      %s24 = ssub.s32 %s19, 1
      %s25 = ssub.s32 %s19, 2
      %s35 = sadd.s32 1, %s28
      %p36 = scmp.ge.s32.totalorder %s35, 1
      %s37 = scalar_select %p36, 0, %s35
      %s38 = sadd.s32 1, %s27
      %s39 = scalar_select %p36, %s38, %s27
      %p40 = scmp.ge.s32.totalorder %s39, 4
      %s41 = scalar_select %p40, 0, %s39
      %s42 = sadd.s32 1, %s26
      %s43 = scalar_select %p40, %s42, %s26
      %p44 = scmp.ge.s32.totalorder %s43, 2
      %s45 = scalar_select %p44, 0, %s43
      %s46 = ssub.s32 %s26, %s45
      %s47 = ssub.s32 %s28, %s37
      %s48 = sor.u32 %s46, %s47
      %p49 = scmp.eq.s32.totalorder %s48, 0
      %s51 = sadd.s32 %s50, 1
      %s52 = scalar_select %p49, %s50, %s51
      %p55 = pneg %p49
      %p56 = scmp.eq.s32.totalorder %s19, 7
      %p57 = por %p55, %p56
      %p58 = scmp.ne.s32.totalorder %s50, %s53
      %p59 = scmp.eq.s32.totalorder %s19, 0
      %p60 = por %p58, %p59
      %p61 = scmp.ne.s32.totalorder %s50, %s53
      %p62 = scmp.eq.s32.totalorder %s24, 7
      %p63 = por %p61, %p62
      %p64 = scmp.ne.s32.totalorder %s53, %s54
      %p65 = scmp.eq.s32.totalorder %s24, 0
      %p66 = por %p64, %p65
      %p67 = scmp.ne.s32.totalorder %s53, %s54
      %p68 = scmp.eq.s32.totalorder %s25, 7
      %p69 = por %p67, %p68
      %p71 = scmp.ne.s32.totalorder %s54, %s70
      %p72 = scmp.eq.s32.totalorder %s25, 0
      %p73 = por %p71, %p72
      %s74 = ssub.s32 %s27, %s41
      %p75 = scmp.eq.s32.totalorder %s74, 0
      %s77 = sadd.s32 %s76, 1
      %s78 = scalar_select %p75, %s76, %s77
      %p81 = pneg %p75
      %p82 = scmp.eq.s32.totalorder %s19, 7
      %p83 = por %p81, %p82
      %p84 = scmp.ne.s32.totalorder %s76, %s79
      %p85 = scmp.eq.s32.totalorder %s19, 0
      %p86 = por %p84, %p85
      %p87 = scmp.ne.s32.totalorder %s76, %s79
      %p88 = scmp.eq.s32.totalorder %s24, 7
      %p89 = por %p87, %p88
      %p90 = scmp.ne.s32.totalorder %s79, %s80
      %p91 = scmp.eq.s32.totalorder %s24, 0
      %p92 = por %p90, %p91
      %p93 = scmp.ne.s32.totalorder %s79, %s80
      %p94 = scmp.eq.s32.totalorder %s25, 7
      %p95 = por %p93, %p94
      %p97 = scmp.ne.s32.totalorder %s80, %s96
      %p98 = scmp.eq.s32.totalorder %s25, 0
      %p99 = por %p97, %p98
      %s100 = ssub.s32 %s27, %s41
      %p101 = scmp.eq.s32.totalorder %s100, 0
      %s103 = sadd.s32 %s102, 1
      %s104 = scalar_select %p101, %s102, %s103
      %p107 = pneg %p101
      %p108 = scmp.eq.s32.totalorder %s19, 7
      %p109 = por %p107, %p108
      %p110 = scmp.ne.s32.totalorder %s102, %s105
      %p111 = scmp.eq.s32.totalorder %s19, 0
      %p112 = por %p110, %p111
      %p113 = scmp.ne.s32.totalorder %s102, %s105
      %p114 = scmp.eq.s32.totalorder %s24, 7
      %p115 = por %p113, %p114
      %p116 = scmp.ne.s32.totalorder %s105, %s106
      %p117 = scmp.eq.s32.totalorder %s24, 0
      %p118 = por %p116, %p117
      %p119 = scmp.ne.s32.totalorder %s105, %s106
      %p120 = scmp.eq.s32.totalorder %s25, 7
      %p121 = por %p119, %p120
      %p123 = scmp.ne.s32.totalorder %s106, %s122
      %p124 = scmp.eq.s32.totalorder %s25, 0
      %p125 = por %p123, %p124
      %s126 = ssub.s32 %s27, %s41
      %p127 = scmp.eq.s32.totalorder %s126, 0
      %s129 = sadd.s32 %s128, 1
      %s130 = scalar_select %p127, %s128, %s129
      %p133 = pneg %p127
      %p134 = scmp.eq.s32.totalorder %s19, 7
      %p135 = por %p133, %p134
      %p136 = scmp.ne.s32.totalorder %s128, %s131
      %p137 = scmp.eq.s32.totalorder %s19, 0
      %p138 = por %p136, %p137
      %p139 = scmp.ne.s32.totalorder %s128, %s131
      %p140 = scmp.eq.s32.totalorder %s24, 7
      %p141 = por %p139, %p140
      %p142 = scmp.ne.s32.totalorder %s131, %s132
      %p143 = scmp.eq.s32.totalorder %s24, 0
      %p144 = por %p142, %p143
      %p145 = scmp.ne.s32.totalorder %s131, %s132
      %p146 = scmp.eq.s32.totalorder %s25, 7
      %p147 = por %p145, %p146
      %p149 = scmp.ne.s32.totalorder %s132, %s148
      %p150 = scmp.eq.s32.totalorder %s25, 0
      %p151 = por %p149, %p150
      %s152 = ssub.s32 %s26, %s45
      %s153 = ssub.s32 %s27, %s41
      %s154 = sor.u32 %s152, %s153
      %s155 = ssub.s32 %s28, %s37
      %s156 = sor.u32 %s154, %s155
      %p157 = scmp.eq.s32.totalorder %s156, 0
      %s159 = sadd.s32 %s158, 1
      %s160 = scalar_select %p157, %s158, %s159
      %p163 = pneg %p157
      %p164 = scmp.eq.s32.totalorder %s19, 7
      %p165 = por %p163, %p164
      %p166 = scmp.ne.s32.totalorder %s158, %s161
      %p167 = scmp.eq.s32.totalorder %s19, 0
      %p168 = por %p166, %p167
      %p169 = scmp.ne.s32.totalorder %s158, %s161
      %p170 = scmp.eq.s32.totalorder %s24, 7
      %p171 = por %p169, %p170
      %p172 = scmp.ne.s32.totalorder %s161, %s162
      %p173 = scmp.eq.s32.totalorder %s24, 0
      %p174 = por %p172, %p173
      %p175 = scmp.ne.s32.totalorder %s161, %s162
      %p176 = scmp.eq.s32.totalorder %s25, 7
      %p177 = por %p175, %p176
      %p179 = scmp.ne.s32.totalorder %s162, %s178
      %p180 = scmp.eq.s32.totalorder %s25, 0
      %p181 = por %p179, %p180
      %s182 = ssub.s32 %s26, %s45
      %s183 = ssub.s32 %s27, %s41
      %s184 = sor.u32 %s182, %s183
      %s185 = ssub.s32 %s28, %s37
      %s186 = sor.u32 %s184, %s185
      %p187 = scmp.eq.s32.totalorder %s186, 0
      %s189 = sadd.s32 %s188, 1
      %s190 = scalar_select %p187, %s188, %s189
      %p193 = pneg %p187
      %p194 = scmp.eq.s32.totalorder %s19, 7
      %p195 = por %p193, %p194
      %p196 = scmp.ne.s32.totalorder %s188, %s191
      %p197 = scmp.eq.s32.totalorder %s19, 0
      %p198 = por %p196, %p197
      %p199 = scmp.ne.s32.totalorder %s188, %s191
      %p200 = scmp.eq.s32.totalorder %s24, 7
      %p201 = por %p199, %p200
      %p202 = scmp.ne.s32.totalorder %s191, %s192
      %p203 = scmp.eq.s32.totalorder %s24, 0
      %p204 = por %p202, %p203
      %p205 = scmp.ne.s32.totalorder %s191, %s192
      %p206 = scmp.eq.s32.totalorder %s25, 7
      %p207 = por %p205, %p206
      %p209 = scmp.ne.s32.totalorder %s192, %s208
      %p210 = scmp.eq.s32.totalorder %s25, 0
      %p211 = por %p209, %p210
      %s212 = ssub.s32 %s26, %s45
      %s213 = ssub.s32 %s27, %s41
      %s214 = sor.u32 %s212, %s213
      %s215 = ssub.s32 %s28, %s37
      %s216 = sor.u32 %s214, %s215
      %p217 = scmp.eq.s32.totalorder %s216, 0
      %s219 = sadd.s32 %s218, 1
      %s220 = scalar_select %p217, %s218, %s219
      %p223 = pneg %p217
      %p224 = scmp.eq.s32.totalorder %s19, 7
      %p225 = por %p223, %p224
      %p226 = scmp.ne.s32.totalorder %s218, %s221
      %p227 = scmp.eq.s32.totalorder %s19, 0
      %p228 = por %p226, %p227
      %p229 = scmp.ne.s32.totalorder %s218, %s221
      %p230 = scmp.eq.s32.totalorder %s24, 7
      %p231 = por %p229, %p230
      %p232 = scmp.ne.s32.totalorder %s221, %s222
      %p233 = scmp.eq.s32.totalorder %s24, 0
      %p234 = por %p232, %p233
      %p235 = scmp.ne.s32.totalorder %s221, %s222
      %p236 = scmp.eq.s32.totalorder %s25, 7
      %p237 = por %p235, %p236
      %p239 = scmp.ne.s32.totalorder %s222, %s238
      %p240 = scmp.eq.s32.totalorder %s25, 0
      %p241 = por %p239, %p240
      %p242 = scmp.le.s32.totalorder 1, %s19
      %p243 = scmp.lt.s32.totalorder %s19, 9
      %p244 = pnand %p242, %p243
      %p245 = pneg %p244
      // Predicated region
      $region9: #{tpu_custom_call.1} parent=5 // pred_check
        _
      $region10: #{tpu_custom_call.1} parent=5 // pred_check_branch
        %247 = sbr.rel (%p244) target = $region12
      $region11: #{tpu_custom_call.1} parent=5 // pred_region
        %s248 = ssub.s32 %s19, 1
      $region12: #{tpu_custom_call.1} parent=5 // pred_fallthru
        _
      %p249 = scmp.lt.s32.totalorder %s19, 8
      // Predicated region
      $region13: #{tpu_custom_call.1} parent=5 // pred_check
        %p250 = pneg %p249
      $region14: #{tpu_custom_call.1} parent=5 // pred_check_branch
        %252 = sbr.rel (%p250) target = $region16
      $region15: #{tpu_custom_call.1} parent=5 // pred_region
        // Predicated region
        $region17: #{tpu_custom_call.1} parent=15 // pred_check
          %p253 = pneg %p60
        $region18: #{tpu_custom_call.1} parent=15 // pred_check_branch
          %255 = sbr.rel (%p253) target = $region20
        $region19: #{tpu_custom_call.1} parent=15 // pred_region
          %p256 = scmp.lt.s32.totalorder %s26, 1
          %s257 = scalar_select %p256, %s26, 1
          %p258 = scmp.lt.s32.totalorder %s28, 0
          %s259 = scalar_select %p258, %s28, 0
          %s260 = sadd.s32 %s259, %s257
          %s261 = smul.addr %s260, 8
          %s262 = scalar_lea.vmem %s0, %s261
        $region20: #{tpu_custom_call.1} parent=15 // pred_fallthru
          _
        // Predicated region
        $region21: #{tpu_custom_call.1} parent=15 // pred_check
          %p263 = pneg %p86
        $region22: #{tpu_custom_call.1} parent=15 // pred_check_branch
          %265 = sbr.rel (%p263) target = $region24
        $region23: #{tpu_custom_call.1} parent=15 // pred_region
          %p266 = scmp.lt.s32.totalorder %s27, 3
          %s267 = scalar_select %p266, %s27, 3
          %s268 = smul.addr %s267, 4
          %s269 = smul.addr %s268, 8
          %s270 = scalar_lea.vmem %s1, %s269
        $region24: #{tpu_custom_call.1} parent=15 // pred_fallthru
          _
        // Predicated region
        $region25: #{tpu_custom_call.1} parent=15 // pred_check
          %p271 = pneg %p112
        $region26: #{tpu_custom_call.1} parent=15 // pred_check_branch
          %273 = sbr.rel (%p271) target = $region28
        $region27: #{tpu_custom_call.1} parent=15 // pred_region
          %p274 = scmp.lt.s32.totalorder %s27, 3
          %s275 = scalar_select %p274, %s27, 3
          %s276 = smul.addr %s275, 4
          %s277 = smul.addr %s276, 8
          %s278 = scalar_lea.vmem %s2, %s277
        $region28: #{tpu_custom_call.1} parent=15 // pred_fallthru
          _
        // Predicated region
        $region29: #{tpu_custom_call.1} parent=15 // pred_check
          %p279 = pneg %p138
        $region30: #{tpu_custom_call.1} parent=15 // pred_check_branch
          %281 = sbr.rel (%p279) target = $region32
        $region31: #{tpu_custom_call.1} parent=15 // pred_region
          %p282 = scmp.lt.s32.totalorder %s27, 3
          %s283 = scalar_select %p282, %s27, 3
          %s284 = smul.addr %s283, 4
          %s285 = smul.addr %s284, 8
          %s286 = scalar_lea.vmem %s3, %s285
        $region32: #{tpu_custom_call.1} parent=15 // pred_fallthru
          _
      $region16: #{tpu_custom_call.1} parent=5 // pred_fallthru
        _
      %p287 = scmp.le.s32.totalorder 1, %s19
      %p288 = scmp.lt.s32.totalorder %s19, 9
      %p289 = pnand %p287, %p288
      %p290 = pneg %p289
      // Predicated region
      $region33: #{tpu_custom_call.1} parent=5 // pred_check
        _
      $region34: #{tpu_custom_call.1} parent=5 // pred_check_branch
        %292 = sbr.rel (%p289) target = $region36
      $region35: #{tpu_custom_call.1} parent=5 // pred_region
        %s293 = ssub.s32 %s19, 1
        %p294 = scmp.lt.s32.totalorder %s29, 1
        %s295 = scalar_select %p294, %s29, 1
        %p296 = scmp.lt.s32.totalorder %s31, 0
        %s297 = scalar_select %p296, %s31, 0
        %s298 = sadd.s32 %s297, %s295
        %s299 = smul.addr %s298, 8
        %s300 = scalar_lea.vmem %s0, %s299
        %p301 = pneg %p66
        %p302 = pneg %p63
        %p303 = scmp.lt.s32.totalorder %s30, 3
        %s304 = scalar_select %p303, %s30, 3
        %s305 = smul.addr %s304, 4
        %s306 = smul.addr %s305, 8
        %s307 = scalar_lea.vmem %s1, %s306
        %p308 = pneg %p92
        %p309 = pneg %p89
        %p310 = scmp.lt.s32.totalorder %s30, 3
        %s311 = scalar_select %p310, %s30, 3
        %s312 = smul.addr %s311, 4
        %s313 = smul.addr %s312, 8
        %s314 = scalar_lea.vmem %s2, %s313
        %p315 = pneg %p118
        %p316 = pneg %p115
        %p317 = scmp.lt.s32.totalorder %s30, 3
        %s318 = scalar_select %p317, %s30, 3
        %s319 = smul.addr %s318, 4
        %s320 = smul.addr %s319, 8
        %s321 = scalar_lea.vmem %s3, %s320
        %p322 = pneg %p144
        %p323 = pneg %p141
        %p324 = pneg %p174
        %p325 = pneg %p171
        %s326 = sand.u32 %s161, 1
        %s327 = scalar_lea.sflag [#allocation3], %s326
        %s328 = sand.u32 %s161, 1
        %s329 = smul.addr %s328, 8
        %s330 = scalar_lea.vmem [#allocation2], %s329
        %p331 = pneg %p204
        %p332 = pneg %p201
        %s333 = sand.u32 %s24, 1
        %s334 = scalar_lea.sflag [#allocation5], %s333
        %s335 = sand.u32 %s191, 1
        %s336 = smul.addr %s335, 8
        %s337 = scalar_lea.vmem [#allocation4], %s336
        %p338 = pneg %p234
        %p339 = pneg %p231
        %s340 = sand.u32 %s24, 1
        %s341 = scalar_lea.sflag [#allocation5], %s340
        %s342 = sand.u32 %s221, 1
        %s343 = smul.addr %s342, 8
        %s344 = scalar_lea.vmem [#allocation6], %s343
        %p345 = scmp.lt.s32.totalorder %s29, 1
        %s346 = scalar_select %p345, %s29, 1
        %p347 = scmp.lt.s32.totalorder %s31, 0
        %s348 = scalar_select %p347, %s31, 0
        %s349 = sadd.s32 %s348, %s346
        %s350 = smul.addr %s349, 8
        %s351 = scalar_lea.vmem %s0, %s350
        %p352 = scmp.lt.s32.totalorder %s30, 3
        %s353 = scalar_select %p352, %s30, 3
        %s354 = smul.addr %s353, 4
        %s355 = smul.addr %s354, 8
        %s356 = scalar_lea.vmem %s1, %s355
        %p357 = scmp.lt.s32.totalorder %s30, 3
        %s358 = scalar_select %p357, %s30, 3
        %s359 = smul.addr %s358, 4
        %s360 = smul.addr %s359, 8
        %s361 = scalar_lea.vmem %s2, %s360
        %p362 = scmp.lt.s32.totalorder %s30, 3
        %s363 = scalar_select %p362, %s30, 3
        %s364 = smul.addr %s363, 4
        %s365 = smul.addr %s364, 8
        %s366 = scalar_lea.vmem %s3, %s365
        %v367 = vld [vmem:[%s351] sm:$0xff]
        %v368 = vld [vmem:[%s356] sm:$0xff]
        %v369 = vld [vmem:[%s356 + $0x8] sm:$0xff]
        %v370 = vld [vmem:[%s356 + $0x10] sm:$0xff]
        %v371 = vld [vmem:[%s356 + $0x18] sm:$0xff]
        %vm372 = vcmask 261120
        %v374 = vsel %vm372, %v367, 0
        %376 = vmatprep.subr.mxu0 0.0
        %377 = vmatpush1.msra.mxu0 0.0
        %378 = vmatprep.subr.mxu0 0.0
        %379 = vmatpush1.msra.mxu0 0.0
        %380 = vmatprep.subr.mxu0 0.0
        %381 = vmatpush1.msra.mxu0 0.0
        %382 = vmatprep.subr.mxu0 0.0
        %383 = vmatpush1.msra.mxu0 0.0
        %384 = vmatprep.subr.mxu0 0.0
        %385 = vmatpush1.msra.mxu0 0.0
        %386 = vmatprep.subr.mxu0 0.0
        %387 = vmatpush1.msra.mxu0 0.0
        %388 = vmatprep.subr.mxu0 0.0
        %389 = vmatpush1.msra.mxu0 0.0
        %390 = vmatprep.subr.mxu0 0.0
        %391 = vmatpush1.msra.mxu0 0.0
        %392 = vmatprep.subr.mxu0 0.0
        %393 = vmatpush1.msra.mxu0 0.0
        %394 = vmatprep.subr.mxu0 0.0
        %395 = vmatpush1.msra.mxu0 0.0
        %396 = vmatprep.subr.mxu0 0.0
        %397 = vmatpush1.msra.mxu0 0.0
        %398 = vmatprep.subr.mxu0 0.0
        %399 = vmatpush1.msra.mxu0 0.0
        %400 = vmatprep.subr.mxu0 0.0
        %401 = vmatpush1.msra.mxu0 %v371
        %402 = vmatprep.subr.mxu0 0.0
        %403 = vmatpush1.msra.mxu0 %v370
        %404 = vmatprep.subr.mxu0 0.0
        %405 = vmatpush1.msra.mxu0 %v369
        %406 = vmatprep.subr.mxu0 0.0
        %407 = vmatpush1.msra.mxu0 %v368
        %408 = vmatprep.subr.mxu0 0.0
        %409 = vmatpush2.msra.mxu0 0.0
        %410 = vmatprep.subr.mxu0 0.0
        %411 = vmatpush2.msra.mxu0 0.0
        %412 = vmatprep.subr.mxu0 0.0
        %413 = vmatpush2.msra.mxu0 0.0
        %414 = vmatprep.subr.mxu0 0.0
        %415 = vmatpush2.msra.mxu0 0.0
        %416 = vmatprep.subr.mxu0 0.0
        %417 = vmatpush2.msra.mxu0 0.0
        %418 = vmatprep.subr.mxu0 0.0
        %419 = vmatpush2.msra.mxu0 0.0
        %420 = vmatprep.subr.mxu0 0.0
        %421 = vmatpush2.msra.mxu0 0.0
        %422 = vmatprep.subr.mxu0 0.0
        %423 = vmatpush2.msra.mxu0 0.0
        %424 = vmatprep.subr.mxu0 0.0
        %425 = vmatpush2.msra.mxu0 0.0
        %426 = vmatprep.subr.mxu0 0.0
        %427 = vmatpush2.msra.mxu0 0.0
        %428 = vmatprep.subr.mxu0 0.0
        %429 = vmatpush2.msra.mxu0 0.0
        %430 = vmatprep.subr.mxu0 0.0
        %431 = vmatpush2.msra.mxu0 0.0
        %432 = vmatprep.subr.mxu0 0.0
        %433 = vmatpush2.msra.mxu0 0.0
        %434 = vmatprep.subr.mxu0 0.0
        %435 = vmatpush2.msra.mxu0 0.0
        %436 = vmatprep.subr.mxu0 0.0
        %437 = vmatpush2.msra.mxu0 0.0
        %438 = vmatprep.subr.mxu0 0.0
        %439 = vmatpush2.msra.mxu0 0.0
        %440 = vmatprep.mubr.f32.mxu0 0.0
        %441 = vmatmul.mubr.f32.gmra.mxu0 %v374
        %v442 = vpop.f32.mrf.mxu0
        %v443 = vadd.f32 0.0, %v442
        %v444 = vpop.f32.mrf.mxu0
        %445 = vdwg.mxu0
        %v446 = vld [vmem:[%s361] sm:$0xff]
        %v447 = vld [vmem:[%s361 + $0x8] sm:$0xff]
        %v448 = vld [vmem:[%s361 + $0x10] sm:$0xff]
        %v449 = vld [vmem:[%s361 + $0x18] sm:$0xff]
        %450 = vmatprep.subr.mxu0 0.0
        %451 = vmatpush1.msra.mxu0 0.0
        %452 = vmatprep.subr.mxu0 0.0
        %453 = vmatpush1.msra.mxu0 0.0
        %454 = vmatprep.subr.mxu0 0.0
        %455 = vmatpush1.msra.mxu0 0.0
        %456 = vmatprep.subr.mxu0 0.0
        %457 = vmatpush1.msra.mxu0 0.0
        %458 = vmatprep.subr.mxu0 0.0
        %459 = vmatpush1.msra.mxu0 0.0
        %460 = vmatprep.subr.mxu0 0.0
        %461 = vmatpush1.msra.mxu0 0.0
        %462 = vmatprep.subr.mxu0 0.0
        %463 = vmatpush1.msra.mxu0 0.0
        %464 = vmatprep.subr.mxu0 0.0
        %465 = vmatpush1.msra.mxu0 0.0
        %466 = vmatprep.subr.mxu0 0.0
        %467 = vmatpush1.msra.mxu0 0.0
        %468 = vmatprep.subr.mxu0 0.0
        %469 = vmatpush1.msra.mxu0 0.0
        %470 = vmatprep.subr.mxu0 0.0
        %471 = vmatpush1.msra.mxu0 0.0
        %472 = vmatprep.subr.mxu0 0.0
        %473 = vmatpush1.msra.mxu0 0.0
        %474 = vmatprep.subr.mxu0 0.0
        %475 = vmatpush1.msra.mxu0 %v449
        %476 = vmatprep.subr.mxu0 0.0
        %477 = vmatpush1.msra.mxu0 %v448
        %478 = vmatprep.subr.mxu0 0.0
        %479 = vmatpush1.msra.mxu0 %v447
        %480 = vmatprep.subr.mxu0 0.0
        %481 = vmatpush1.msra.mxu0 %v446
        %482 = vmatprep.subr.mxu0 0.0
        %483 = vmatpush2.msra.mxu0 0.0
        %484 = vmatprep.subr.mxu0 0.0
        %485 = vmatpush2.msra.mxu0 0.0
        %486 = vmatprep.subr.mxu0 0.0
        %487 = vmatpush2.msra.mxu0 0.0
        %488 = vmatprep.subr.mxu0 0.0
        %489 = vmatpush2.msra.mxu0 0.0
        %490 = vmatprep.subr.mxu0 0.0
        %491 = vmatpush2.msra.mxu0 0.0
        %492 = vmatprep.subr.mxu0 0.0
        %493 = vmatpush2.msra.mxu0 0.0
        %494 = vmatprep.subr.mxu0 0.0
        %495 = vmatpush2.msra.mxu0 0.0
        %496 = vmatprep.subr.mxu0 0.0
        %497 = vmatpush2.msra.mxu0 0.0
        %498 = vmatprep.subr.mxu0 0.0
        %499 = vmatpush2.msra.mxu0 0.0
        %500 = vmatprep.subr.mxu0 0.0
        %501 = vmatpush2.msra.mxu0 0.0
        %502 = vmatprep.subr.mxu0 0.0
        %503 = vmatpush2.msra.mxu0 0.0
        %504 = vmatprep.subr.mxu0 0.0
        %505 = vmatpush2.msra.mxu0 0.0
        %506 = vmatprep.subr.mxu0 0.0
        %507 = vmatpush2.msra.mxu0 0.0
        %508 = vmatprep.subr.mxu0 0.0
        %509 = vmatpush2.msra.mxu0 0.0
        %510 = vmatprep.subr.mxu0 0.0
        %511 = vmatpush2.msra.mxu0 0.0
        %512 = vmatprep.subr.mxu0 0.0
        %513 = vmatpush2.msra.mxu0 0.0
        %514 = vmatprep.mubr.f32.mxu0 0.0
        %515 = vmatmul.mubr.f32.gmra.mxu0 %v374
        %v516 = vpop.f32.mrf.mxu0
        %v517 = vadd.f32 0.0, %v516
        %v518 = vpop.f32.mrf.mxu0
        %519 = vdwg.mxu0
        %v520 = vld [vmem:[%s366] sm:$0xff]
        %v521 = vld [vmem:[%s366 + $0x8] sm:$0xff]
        %v522 = vld [vmem:[%s366 + $0x10] sm:$0xff]
        %v523 = vld [vmem:[%s366 + $0x18] sm:$0xff]
        %524 = vmatprep.subr.mxu0 0.0
        %525 = vmatpush1.msra.mxu0 0.0
        %526 = vmatprep.subr.mxu0 0.0
        %527 = vmatpush1.msra.mxu0 0.0
        %528 = vmatprep.subr.mxu0 0.0
        %529 = vmatpush1.msra.mxu0 0.0
        %530 = vmatprep.subr.mxu0 0.0
        %531 = vmatpush1.msra.mxu0 0.0
        %532 = vmatprep.subr.mxu0 0.0
        %533 = vmatpush1.msra.mxu0 0.0
        %534 = vmatprep.subr.mxu0 0.0
        %535 = vmatpush1.msra.mxu0 0.0
        %536 = vmatprep.subr.mxu0 0.0
        %537 = vmatpush1.msra.mxu0 0.0
        %538 = vmatprep.subr.mxu0 0.0
        %539 = vmatpush1.msra.mxu0 0.0
        %540 = vmatprep.subr.mxu0 0.0
        %541 = vmatpush1.msra.mxu0 0.0
        %542 = vmatprep.subr.mxu0 0.0
        %543 = vmatpush1.msra.mxu0 0.0
        %544 = vmatprep.subr.mxu0 0.0
        %545 = vmatpush1.msra.mxu0 0.0
        %546 = vmatprep.subr.mxu0 0.0
        %547 = vmatpush1.msra.mxu0 0.0
        %548 = vmatprep.subr.mxu0 0.0
        %549 = vmatpush1.msra.mxu0 %v523
        %550 = vmatprep.subr.mxu0 0.0
        %551 = vmatpush1.msra.mxu0 %v522
        %552 = vmatprep.subr.mxu0 0.0
        %553 = vmatpush1.msra.mxu0 %v521
        %554 = vmatprep.subr.mxu0 0.0
        %555 = vmatpush1.msra.mxu0 %v520
        %556 = vmatprep.subr.mxu0 0.0
        %557 = vmatpush2.msra.mxu0 0.0
        %558 = vmatprep.subr.mxu0 0.0
        %559 = vmatpush2.msra.mxu0 0.0
        %560 = vmatprep.subr.mxu0 0.0
        %561 = vmatpush2.msra.mxu0 0.0
        %562 = vmatprep.subr.mxu0 0.0
        %563 = vmatpush2.msra.mxu0 0.0
        %564 = vmatprep.subr.mxu0 0.0
        %565 = vmatpush2.msra.mxu0 0.0
        %566 = vmatprep.subr.mxu0 0.0
        %567 = vmatpush2.msra.mxu0 0.0
        %568 = vmatprep.subr.mxu0 0.0
        %569 = vmatpush2.msra.mxu0 0.0
        %570 = vmatprep.subr.mxu0 0.0
        %571 = vmatpush2.msra.mxu0 0.0
        %572 = vmatprep.subr.mxu0 0.0
        %573 = vmatpush2.msra.mxu0 0.0
        %574 = vmatprep.subr.mxu0 0.0
        %575 = vmatpush2.msra.mxu0 0.0
        %576 = vmatprep.subr.mxu0 0.0
        %577 = vmatpush2.msra.mxu0 0.0
        %578 = vmatprep.subr.mxu0 0.0
        %579 = vmatpush2.msra.mxu0 0.0
        %580 = vmatprep.subr.mxu0 0.0
        %581 = vmatpush2.msra.mxu0 0.0
        %582 = vmatprep.subr.mxu0 0.0
        %583 = vmatpush2.msra.mxu0 0.0
        %584 = vmatprep.subr.mxu0 0.0
        %585 = vmatpush2.msra.mxu0 0.0
        %586 = vmatprep.subr.mxu0 0.0
        %587 = vmatpush2.msra.mxu0 0.0
        %588 = vmatprep.mubr.f32.mxu0 0.0
        %589 = vmatmul.mubr.f32.gmra.mxu0 %v374
        %v590 = vpop.f32.mrf.mxu0
        %v591 = vadd.f32 0.0, %v590
        %v592 = vpop.f32.mrf.mxu0
        %593 = vdwg.mxu0
        %v594 = vmul.f32 %v443, 0.5100697
        %vm595 = vcmask 64512
        %596 = vst.msk [vmem:[%s330] sm:$0xff] %vm595, %v594
        %597 = vst.msk [vmem:[%s337] sm:$0xff] %vm595, %v517
        %598 = vst.msk [vmem:[%s344] sm:$0xff] %vm595, %v591
        %s599 = sand.u32 %s161, 1
        %s600 = scalar_lea.sflag [#allocation3], %s599
        %s601 = sand.u32 %s161, 1
        %s602 = smul.addr %s601, 8
        %s603 = scalar_lea.vmem [#allocation2], %s602
        %s604 = sand.u32 %s24, 1
        %s605 = scalar_lea.sflag [#allocation5], %s604
        %s606 = sand.u32 %s191, 1
        %s607 = smul.addr %s606, 8
        %s608 = scalar_lea.vmem [#allocation4], %s607
        %s609 = sand.u32 %s24, 1
        %s610 = scalar_lea.sflag [#allocation5], %s609
        %s611 = sand.u32 %s221, 1
        %s612 = smul.addr %s611, 8
        %s613 = scalar_lea.vmem [#allocation6], %s612
        // Predicated region
        $region37: #{tpu_custom_call.1} parent=35 // pred_check
          %p614 = pneg %p171
        $region38: #{tpu_custom_call.1} parent=35 // pred_check_branch
          %616 = sbr.rel (%p614) target = $region40
        $region39: #{tpu_custom_call.1} parent=35 // pred_region
          %s618 = ssub.s32 128, 128
          %619 = vsyncadd %s600, %s618
          %s620 = sadd.s32 %s31, %s30
          %s621 = smul.addr %s29, 4
          %s622 = sadd.s32 %s620, %s621
          %s623 = smul.addr %s622, 128
          %s624 = scalar_lea.hbm %s4, %s623
          %s626 = sshll.u32 %s603, 4
          %s627 = int_to_ptr.vmem [resolvable:$true] %s626
          %629 = dma.vmem_to_hbm [thread:$0]  %s627, 128, %s624, %s600
        $region40: #{tpu_custom_call.1} parent=35 // pred_fallthru
          _
        // Predicated region
        $region41: #{tpu_custom_call.1} parent=35 // pred_check
          %p630 = pneg %p201
        $region42: #{tpu_custom_call.1} parent=35 // pred_check_branch
          %632 = sbr.rel (%p630) target = $region44
        $region43: #{tpu_custom_call.1} parent=35 // pred_region
          %s634 = ssub.s32 128, 128
          %635 = vsyncadd %s605, %s634
          %s636 = sadd.s32 %s31, %s30
          %s637 = smul.addr %s29, 4
          %s638 = sadd.s32 %s636, %s637
          %s639 = smul.addr %s638, 128
          %s640 = scalar_lea.hbm %s5, %s639
          %s642 = sshll.u32 %s608, 4
          %s643 = int_to_ptr.vmem [resolvable:$true] %s642
          %645 = dma.vmem_to_hbm [thread:$0]  %s643, 128, %s640, %s605
        $region44: #{tpu_custom_call.1} parent=35 // pred_fallthru
          _
        // Predicated region
        $region45: #{tpu_custom_call.1} parent=35 // pred_check
          %p646 = pneg %p231
        $region46: #{tpu_custom_call.1} parent=35 // pred_check_branch
          %648 = sbr.rel (%p646) target = $region48
        $region47: #{tpu_custom_call.1} parent=35 // pred_region
          %s650 = ssub.s32 128, 128
          %651 = vsyncadd %s610, %s650
          %s652 = sadd.s32 %s31, %s30
          %s653 = smul.addr %s29, 4
          %s654 = sadd.s32 %s652, %s653
          %s655 = smul.addr %s654, 128
          %s656 = scalar_lea.hbm %s6, %s655
          %s658 = sshll.u32 %s613, 4
          %s659 = int_to_ptr.vmem [resolvable:$true] %s658
          %661 = dma.vmem_to_hbm [thread:$0]  %s659, 128, %s656, %s610
        $region48: #{tpu_custom_call.1} parent=35 // pred_fallthru
          _
      $region36: #{tpu_custom_call.1} parent=5 // pred_fallthru
        _
      %p662 = scmp.le.s32.totalorder 2, %s19
      // Predicated region
      $region49: #{tpu_custom_call.1} parent=5 // pred_check
        %p663 = pneg %p662
      $region50: #{tpu_custom_call.1} parent=5 // pred_check_branch
        %665 = sbr.rel (%p663) target = $region52
      $region51: #{tpu_custom_call.1} parent=5 // pred_region
        %s666 = ssub.s32 %s19, 2
        // Predicated region
        $region53: #{tpu_custom_call.1} parent=51 // pred_check
          %p667 = pneg %p177
        $region54: #{tpu_custom_call.1} parent=51 // pred_check_branch
          %669 = sbr.rel (%p667) target = $region56
        $region55: #{tpu_custom_call.1} parent=51 // pred_region
          %s670 = sand.u32 %s162, 1
          %s671 = scalar_lea.sflag [#allocation3], %s670
          %s672 = sand.u32 %s162, 1
          %s673 = smul.addr %s672, 8
          %s674 = scalar_lea.vmem [#allocation2], %s673
          %675 = dma.done %s671, 128
        $region56: #{tpu_custom_call.1} parent=51 // pred_fallthru
          _
        // Predicated region
        $region57: #{tpu_custom_call.1} parent=51 // pred_check
          %p676 = pneg %p207
        $region58: #{tpu_custom_call.1} parent=51 // pred_check_branch
          %678 = sbr.rel (%p676) target = $region60
        $region59: #{tpu_custom_call.1} parent=51 // pred_region
          %s679 = sand.u32 %s25, 1
          %s680 = scalar_lea.sflag [#allocation5], %s679
          %s681 = sand.u32 %s192, 1
          %s682 = smul.addr %s681, 8
          %s683 = scalar_lea.vmem [#allocation4], %s682
          %684 = dma.done %s680, 128
        $region60: #{tpu_custom_call.1} parent=51 // pred_fallthru
          _
        // Predicated region
        $region61: #{tpu_custom_call.1} parent=51 // pred_check
          %p685 = pneg %p237
        $region62: #{tpu_custom_call.1} parent=51 // pred_check_branch
          %687 = sbr.rel (%p685) target = $region64
        $region63: #{tpu_custom_call.1} parent=51 // pred_region
          %s688 = sand.u32 %s25, 1
          %s689 = scalar_lea.sflag [#allocation5], %s688
          %s690 = sand.u32 %s222, 1
          %s691 = smul.addr %s690, 8
          %s692 = scalar_lea.vmem [#allocation6], %s691
          %693 = dma.done %s689, 128
        $region64: #{tpu_custom_call.1} parent=51 // pred_fallthru
          _
      $region52: #{tpu_custom_call.1} parent=5 // pred_fallthru
        _
    $region6: #{tpu_custom_call.1} parent=1 // loop_footer
      %s23 = sadd.s32 1, %s19
    $region7: #{tpu_custom_call.1} parent=1 // loop_footer_branch
      %18 = sbr.rel target = $region3
    $region8: #{tpu_custom_call.1} parent=1 // loop_exit
      _
    %694 = vsyncpa [#allocation3], 1
    %s695 = scalar_lea.sflag [#allocation3], 1
    %696 = vsyncpa %s695, 1
    %697 = vsyncpa [#allocation5], 1
    %s698 = scalar_lea.sflag [#allocation5], 1
    %699 = vsyncpa %s698, 1

</llo_original>
